<compile_context>
chip_gen: v7x
topology: tpu7x:2x2x1
jax: 0.10.0
libtpu: 0.0.40
codegen_flags: <defaults>
</compile_context>

<pallas_src>
import jax
import jax.numpy as jnp
from jax.experimental import pallas as pl
from jax.experimental.pallas import tpu as pltpu


def _cvae_loss_kernel(beta_ref, mu_q_ref, logvar_q_ref, mu_r1_ref, logvar_r1_ref,
                      x_tgt_ref, x_smp_ref, out_ref):
    # ---- reconstruction: smooth_l1_loss(x_samp, x_targets, reduction='sum') ----
    # PyTorch default smooth-L1 threshold (its `beta`) = 1.0.
    d = x_smp_ref[...] - x_tgt_ref[...]                       # (rows, 128) f32
    ad = jnp.abs(d)
    sl1 = jnp.where(ad < 1.0, 0.5 * d * d, ad - 0.5)
    recon_row = jnp.sum(sl1, axis=0, keepdims=True)           # (1, 128) sublane reduce

    # ---- KL(q || r1) = -0.5 * sum(1 + lq - lr - ((mq-mr)^2 + exp(lq)) / exp(lr)) ----
    mq = mu_q_ref[...]
    lq = logvar_q_ref[...]
    mr = mu_r1_ref[...]
    lr = logvar_r1_ref[...]                                   # each (B, Z) f32
    dm = mq - mr
    inv_var_r = jnp.exp(-lr)                                  # avoids an f32 divide
    kl_terms = 1.0 + lq - lr - (dm * dm + jnp.exp(lq)) * inv_var_r
    scale = -0.5 * beta_ref[0]                                # fold -0.5 * beta once
    kl_row = scale * jnp.sum(kl_terms, axis=0, keepdims=True)  # (1, Z) sublane reduce

    # Zero-extend the KL row into the unused lanes of the recon row so a single
    # cross-lane reduce (one XLU rotate+add chain) finishes both terms.
    pad = recon_row.shape[1] - kl_row.shape[1]
    if pad:
        kl_row = jnp.concatenate(
            [kl_row, jnp.zeros((1, pad), jnp.float32)], axis=1)  # (1, 128)

    out_ref[0] = jnp.sum(recon_row + kl_row)                  # single full reduce


@jax.jit
def cvae_loss(mu_q, logvar_q, mu_r1, logvar_r1, x_targets, x_samp, beta=0.1):
    """Pallas TPU implementation of cvae_loss_function.forward."""
    f32 = jnp.float32
    lanes = 128
    n = x_targets.size
    assert n % lanes == 0, "data size must be lane-divisible for this small-shape kernel"
    rows = n // lanes

    # Contiguous reshape -> free bitcast; no packing fusion in front of the kernel.
    x_tgt = x_targets.astype(f32).reshape(rows, lanes)
    x_smp = x_samp.astype(f32).reshape(rows, lanes)
    beta_arr = jnp.asarray(beta, dtype=f32).reshape(1)        # 1D SMEM scalar

    vmem = pl.BlockSpec(memory_space=pltpu.MemorySpace.VMEM)
    smem = pl.BlockSpec(memory_space=pltpu.MemorySpace.SMEM)

    nz = mu_q.size
    out = pl.pallas_call(
        _cvae_loss_kernel,
        out_shape=jax.ShapeDtypeStruct((1,), f32),
        in_specs=[smem, vmem, vmem, vmem, vmem, vmem, vmem],
        out_specs=smem,
        cost_estimate=pl.CostEstimate(
            flops=6 * n + 10 * nz,
            transcendentals=2 * nz,
            bytes_accessed=4 * (2 * n + 4 * nz) + 8),
    )(beta_arr,
      mu_q.astype(f32), logvar_q.astype(f32),
      mu_r1.astype(f32), logvar_r1.astype(f32),
      x_tgt, x_smp)
    return out[0]


def _reference(mu_q, logvar_q, mu_r1, logvar_r1, x_targets, x_samp, beta=0.1):
    d = (x_samp - x_targets).reshape(-1)
    ad = jnp.abs(d)
    recon = jnp.sum(jnp.where(ad < 1.0, 0.5 * d * d, ad - 0.5))
    kl = -0.5 * jnp.sum(
        1.0 + logvar_q - logvar_r1
        - ((mu_q - mu_r1) ** 2 + jnp.exp(logvar_q)) / jnp.exp(logvar_r1)
    )
    return recon + beta * kl


if __name__ == "__main__":
    key = jax.random.PRNGKey(0)
    kq, klq, kr, klr, kt, ks = jax.random.split(key, 6)

    B, C, H, W = 2, 4, 16, 16   # data shape (NCHW convention from the PyTorch side)
    Z = 32                      # latent dim

    mu_q      = jax.random.normal(kq,  (B, Z), dtype=jnp.float32)
    logvar_q  = 0.5 * jax.random.normal(klq, (B, Z), dtype=jnp.float32)
    mu_r1     = jax.random.normal(kr,  (B, Z), dtype=jnp.float32)
    logvar_r1 = 0.5 * jax.random.normal(klr, (B, Z), dtype=jnp.float32)
    x_targets = jax.random.normal(kt,  (B, C, H, W), dtype=jnp.float32)
    x_samp    = jax.random.normal(ks,  (B, C, H, W), dtype=jnp.float32)

    loss = cvae_loss(mu_q, logvar_q, mu_r1, logvar_r1, x_targets, x_samp, beta=0.1)
    loss = jax.block_until_ready(loss)

    ref = _reference(mu_q, logvar_q, mu_r1, logvar_r1, x_targets, x_samp, beta=0.1)
    assert jnp.allclose(loss, ref, rtol=1e-5, atol=1e-5), (loss, ref)

    print("KERNEL_OK")
</pallas_src>

<mosaic_0001>
module attributes {stable_mosaic.version = 11 : i64} {
  func.func @_cvae_loss_kernel(%arg0: memref<1xf32, #tpu.memory_space<smem>>, %arg1: memref<2x32xf32, #tpu.memory_space<vmem>>, %arg2: memref<2x32xf32, #tpu.memory_space<vmem>>, %arg3: memref<2x32xf32, #tpu.memory_space<vmem>>, %arg4: memref<2x32xf32, #tpu.memory_space<vmem>>, %arg5: memref<16x128xf32, #tpu.memory_space<vmem>>, %arg6: memref<16x128xf32, #tpu.memory_space<vmem>>, %arg7: memref<1xf32, #tpu.memory_space<smem>>) attributes {dimension_semantics = [], scalar_prefetch = 0 : i64, scratch_operands = 0 : i64, tpu.core_type = #tpu.core_type<tc>} {
    %c0 = arith.constant 0 : index
    %c0_0 = arith.constant 0 : index
    %0 = vector.load %arg6[%c0, %c0_0] : memref<16x128xf32, #tpu.memory_space<vmem>>, vector<16x128xf32>
    %c0_1 = arith.constant 0 : index
    %c0_2 = arith.constant 0 : index
    %1 = vector.load %arg5[%c0_1, %c0_2] : memref<16x128xf32, #tpu.memory_space<vmem>>, vector<16x128xf32>
    %2 = arith.subf %0, %1 : vector<16x128xf32>
    %3 = math.absf %2 : vector<16x128xf32>
    %cst = arith.constant 1.000000e+00 : f32
    %4 = vector.broadcast %cst : f32 to vector<16x128xf32>
    %5 = arith.cmpf olt, %3, %4 : vector<16x128xf32>
    %cst_3 = arith.constant 5.000000e-01 : f32
    %6 = vector.broadcast %cst_3 : f32 to vector<16x128xf32>
    %7 = arith.mulf %6, %2 : vector<16x128xf32>
    %8 = arith.mulf %7, %2 : vector<16x128xf32>
    %cst_4 = arith.constant 5.000000e-01 : f32
    %9 = vector.broadcast %cst_4 : f32 to vector<16x128xf32>
    %10 = arith.subf %3, %9 : vector<16x128xf32>
    %11 = arith.select %5, %8, %10 : vector<16x128xi1>, vector<16x128xf32>
    %cst_5 = arith.constant dense<0.000000e+00> : vector<128xf32>
    %12 = vector.multi_reduction <add>, %11, %cst_5 [0] : vector<16x128xf32> to vector<128xf32>
    %13 = vector.shape_cast %12 : vector<128xf32> to vector<1x128xf32>
    %c0_6 = arith.constant 0 : index
    %c0_7 = arith.constant 0 : index
    %14 = vector.load %arg1[%c0_6, %c0_7] : memref<2x32xf32, #tpu.memory_space<vmem>>, vector<2x32xf32>
    %c0_8 = arith.constant 0 : index
    %c0_9 = arith.constant 0 : index
    %15 = vector.load %arg2[%c0_8, %c0_9] : memref<2x32xf32, #tpu.memory_space<vmem>>, vector<2x32xf32>
    %c0_10 = arith.constant 0 : index
    %c0_11 = arith.constant 0 : index
    %16 = vector.load %arg3[%c0_10, %c0_11] : memref<2x32xf32, #tpu.memory_space<vmem>>, vector<2x32xf32>
    %c0_12 = arith.constant 0 : index
    %c0_13 = arith.constant 0 : index
    %17 = vector.load %arg4[%c0_12, %c0_13] : memref<2x32xf32, #tpu.memory_space<vmem>>, vector<2x32xf32>
    %18 = arith.subf %14, %16 : vector<2x32xf32>
    %cst_14 = arith.constant 0.000000e+00 : f32
    %19 = vector.broadcast %cst_14 : f32 to vector<2x32xf32>
    %20 = arith.subf %19, %17 : vector<2x32xf32>
    %21 = math.exp %20 : vector<2x32xf32>
    %cst_15 = arith.constant 1.000000e+00 : f32
    %22 = vector.broadcast %cst_15 : f32 to vector<2x32xf32>
    %23 = arith.addf %22, %15 : vector<2x32xf32>
    %24 = arith.subf %23, %17 : vector<2x32xf32>
    %25 = arith.mulf %18, %18 : vector<2x32xf32>
    %26 = math.exp %15 : vector<2x32xf32>
    %27 = arith.addf %25, %26 : vector<2x32xf32>
    %28 = arith.mulf %27, %21 : vector<2x32xf32>
    %29 = arith.subf %24, %28 : vector<2x32xf32>
    %c0_16 = arith.constant 0 : index
    %30 = memref.load %arg0[%c0_16] : memref<1xf32, #tpu.memory_space<smem>>
    %cst_17 = arith.constant -5.000000e-01 : f32
    %31 = arith.mulf %cst_17, %30 : f32
    %cst_18 = arith.constant dense<0.000000e+00> : vector<32xf32>
    %32 = vector.multi_reduction <add>, %29, %cst_18 [0] : vector<2x32xf32> to vector<32xf32>
    %33 = vector.shape_cast %32 : vector<32xf32> to vector<1x32xf32>
    %34 = vector.broadcast %31 : f32 to vector<1x32xf32>
    %35 = arith.mulf %34, %33 : vector<1x32xf32>
    %cst_19 = arith.constant 0.000000e+00 : f32
    %36 = vector.broadcast %cst_19 : f32 to vector<1x96xf32>
    %37 = tpu.concatenate %35, %36 in 1 : vector<1x32xf32>, vector<1x96xf32> -> vector<1x128xf32>
    %38 = arith.addf %13, %37 : vector<1x128xf32>
    %39 = vector.shape_cast %38 : vector<1x128xf32> to vector<1x1x128xf32>
    %cst_20 = arith.constant dense<0.000000e+00> : vector<1xf32>
    %40 = vector.multi_reduction <add>, %39, %cst_20 [1, 2] : vector<1x1x128xf32> to vector<1xf32>
    %41 = vector.shape_cast %40 : vector<1xf32> to vector<1x1x1xf32>
    %42 = vector.extract %41[0, 0, 0] : f32 from vector<1x1x1xf32>
    %c0_21 = arith.constant 0 : index
    %43 = memref.load %arg7[%c0_21] : memref<1xf32, #tpu.memory_space<smem>>
    memref.store %42, %arg7[%c0_21] : memref<1xf32, #tpu.memory_space<smem>>
    return
  }
}

</mosaic_0001>

<llo_original>
// kernel: cvae_loss.1
$region0: #{cvae_loss.1}
  #allocation0 [shape = 'u32[]', space=smem, size = 0x4, offset = 0x4, fixed_abs, tag = 'smem constant byte address 0x4 - core index']
  #allocation1 [shape = 'u32[144,128]{1,0:T(1,128)}', space=vmem, size = 0x12000, scoped, tag = 'internal scratch']
  #allocation2 [shape = 'f32[1]{0:T(128)S(6)}', space=smem, size = 0x200, scoped, tag = 'scoped memory for cvae_loss.1']
  %s0 = inlined_call_operand.<no memory space> [shape: f32[1], index: 0, kind: input, shape index: {}]
  %s1 = inlined_call_operand.vmem [shape: f32[2,32], index: 1, kind: input, shape index: {}]
  %s2 = inlined_call_operand.vmem [shape: f32[2,32], index: 2, kind: input, shape index: {}]
  %s3 = inlined_call_operand.vmem [shape: f32[2,32], index: 3, kind: input, shape index: {}]
  %s4 = inlined_call_operand.vmem [shape: f32[2,32], index: 4, kind: input, shape index: {}]
  %s5 = inlined_call_operand.vmem [shape: f32[16,128], index: 5, kind: input, shape index: {}]
  %s6 = inlined_call_operand.vmem [shape: f32[16,128], index: 6, kind: input, shape index: {}]
  %s7 = inlined_call_operand.hbm [shape: f32[1], index: 7, kind: output, shape index: {}]
  %s8 = sld [smem:[#allocation0]]
  $region38: #{cvae_loss.1} parent=0
    _
  %s10 = ssub.s32 1, %s8
  %s11 = scalar_select 0, %s10, %s8
  %12 = sst [smem:[#allocation2]] %s0
  $region1: #{cvae_loss.1} parent=0
    #allocation3 [shape = 'u8[512]{0}', space=smem, size = 0x200, scoped, tag = 'output window, operand 0, single buffered']
    #allocation4 [shape = 's32[1]{0}', space=sflag, size = 0x4, scoped, tag = 'scoped memory for cvae_loss.1']
    %13 = vsyncpa [#allocation4], 0
    // Predicated region
    $region2: #{cvae_loss.1} parent=1 // pred_check
      _
    $region3: #{cvae_loss.1} parent=1 // pred_check_branch
      %15 = sbr.rel (0) target = $region5
    $region4: #{cvae_loss.1} parent=1 // pred_region
      _
    $region5: #{cvae_loss.1} parent=1 // pred_fallthru
      _
    // Predicated region
    $region6: #{cvae_loss.1} parent=1 // pred_check
      _
    $region7: #{cvae_loss.1} parent=1 // pred_check_branch
      %17 = sbr.rel (0) target = $region9
    $region8: #{cvae_loss.1} parent=1 // pred_region
      _
    $region9: #{cvae_loss.1} parent=1 // pred_fallthru
      _
    // Predicated region
    $region10: #{cvae_loss.1} parent=1 // pred_check
      _
    $region11: #{cvae_loss.1} parent=1 // pred_check_branch
      %19 = sbr.rel (0) target = $region13
    $region12: #{cvae_loss.1} parent=1 // pred_region
      _
    $region13: #{cvae_loss.1} parent=1 // pred_fallthru
      _
    // Predicated region
    $region14: #{cvae_loss.1} parent=1 // pred_check
      _
    $region15: #{cvae_loss.1} parent=1 // pred_check_branch
      %21 = sbr.rel (0) target = $region17
    $region16: #{cvae_loss.1} parent=1 // pred_region
      _
    $region17: #{cvae_loss.1} parent=1 // pred_fallthru
      _
    // Predicated region
    $region18: #{cvae_loss.1} parent=1 // pred_check
      _
    $region19: #{cvae_loss.1} parent=1 // pred_check_branch
      %23 = sbr.rel (0) target = $region21
    $region20: #{cvae_loss.1} parent=1 // pred_region
      _
    $region21: #{cvae_loss.1} parent=1 // pred_fallthru
      _
    // Predicated region
    $region22: #{cvae_loss.1} parent=1 // pred_check
      _
    $region23: #{cvae_loss.1} parent=1 // pred_check_branch
      %25 = sbr.rel (0) target = $region25
    $region24: #{cvae_loss.1} parent=1 // pred_region
      _
    $region25: #{cvae_loss.1} parent=1 // pred_fallthru
      _
    // Predicated region
    $region26: #{cvae_loss.1} parent=1 // pred_check
      _
    $region27: #{cvae_loss.1} parent=1 // pred_check_branch
      %27 = sbr.rel (0) target = $region29
    $region28: #{cvae_loss.1} parent=1 // pred_region
      _
    $region29: #{cvae_loss.1} parent=1 // pred_fallthru
      _
    %v28 = vld [vmem:[%s6] sm:$0xff]
    %v29 = vld [vmem:[%s6 + $0x8] sm:$0xff]
    %v30 = vld [vmem:[%s5] sm:$0xff]
    %v31 = vld [vmem:[%s5 + $0x8] sm:$0xff]
    %v32 = vsub.f32 %v28, %v30
    %v33 = vsub.f32 %v29, %v31
    %v34 = vand.u32 2147483647, %v32
    %v35 = vand.u32 2147483647, %v33
    %vm36 = vcmp.lt.f32.partialorder %v34, 1.0
    %vm37 = vcmp.lt.f32.partialorder %v35, 1.0
    %v38 = vmul.f32 %v32, 0.5
    %v39 = vmul.f32 %v33, 0.5
    %v40 = vmul.f32 %v38, %v32
    %v41 = vmul.f32 %v39, %v33
    %v42 = vsub.f32 %v34, 0.5
    %v43 = vsub.f32 %v35, 0.5
    %v44 = vsel %vm36, %v40, %v42
    %v45 = vsel %vm37, %v41, %v43
    %v46 = vadd.f32 %v44, %v45
    %v47 = vrot.slane %v46, 4
    %v48 = vadd.f32 %v46, %v47
    %v49 = vrot.slane %v48, 2
    %v50 = vadd.f32 %v48, %v49
    %v51 = vrot.slane %v50, 1
    %v52 = vadd.f32 %v50, %v51
    %v53 = vld [vmem:[%s1] sm:$0x3]
    %v54 = vld [vmem:[%s2] sm:$0x3]
    %v55 = vld [vmem:[%s3] sm:$0x3]
    %v56 = vld [vmem:[%s4] sm:$0x3]
    %v57 = vsub.f32 %v53, %v55
    %v58 = vsub.f32 0.0, %v56
    %v59 = vmul.f32 %v58, 1.442695
    %v60 = vpow.pop %v59
    %v61 = vadd.f32 %v54, 1.0
    %v62 = vsub.f32 %v61, %v56
    %v63 = vmul.f32 %v57, %v57
    %v64 = vmul.f32 %v54, 1.442695
    %v65 = vpow.pop %v64
    %v66 = vadd.f32 %v63, %v65
    %v67 = vmul.f32 %v66, %v60
    %v68 = vsub.f32 %v62, %v67
    %s69 = sld [smem:[#allocation2]]
    %s70 = smul.f32 %s69, -0.5
    %vm71 = vcmask 254976
    %v72 = vsel %vm71, %v68, 0.0
    %v73 = vrot.slane %v72, 4
    %v74 = vadd.f32 %v72, %v73
    %v75 = vrot.slane %v74, 2
    %v76 = vadd.f32 %v74, %v75
    %v77 = vrot.slane %v76, 1
    %v78 = vadd.f32 %v76, %v77
    %v79 = vstv %s70
    %v80 = vmul.f32 %v79, %v78
    %vm81 = vcmask 261120
    %v82 = vsel %vm81, %v80, 0.0
    %v83 = vadd.f32 %v52, %v82
    %vm84 = vcmask 1040384
    %v85 = vsel %vm84, %v83, 0.0
    %86 = vadd.xlane.f32.xlu0 %v85
    %v87 = vpop.xlane.xlu0 %86
    %v88 = vrot.slane %v87, 4
    %v89 = vadd.f32 %v87, %v88
    %v90 = vrot.slane %v89, 2
    %v91 = vadd.f32 %v89, %v90
    %v92 = vrot.slane %v91, 1
    %v93 = vadd.f32 %v91, %v92
    %s94 = vtos %v93
    %s95 = scalar_lea.smem [#allocation3], 0
    %96 = sst [smem:[%s95]] %s94
    // Predicated region
    $region30: #{cvae_loss.1} parent=1 // pred_check
      _
    $region31: #{cvae_loss.1} parent=1 // pred_check_branch
      %98 = sbr.rel (0) target = $region33
    $region32: #{cvae_loss.1} parent=1 // pred_region
      %s100 = ssub.s32 16, 16
      %101 = vsyncadd [#allocation4], %s100
      %104 = dma.smem_to_hbm [#allocation3], 16, %s7, [#allocation4]
    $region33: #{cvae_loss.1} parent=1 // pred_fallthru
      _
    // Predicated region
    $region34: #{cvae_loss.1} parent=1 // pred_check
      _
    $region35: #{cvae_loss.1} parent=1 // pred_check_branch
      %106 = sbr.rel (0) target = $region37
    $region36: #{cvae_loss.1} parent=1 // pred_region
      %107 = dma.done [#allocation4], 16
    $region37: #{cvae_loss.1} parent=1 // pred_fallthru
      _
    %108 = sfence
    %109 = vsyncpa [#allocation4], 1

</llo_original>
